<compile_context>
chip_gen: v7x
topology: tpu7x:2x2x1
jax: 0.10.0
libtpu: 0.0.40
codegen_flags: <defaults>
</compile_context>

<pallas_src>
import jax
import jax.numpy as jnp
from jax.experimental import pallas as pl
from jax.experimental.pallas import tpu as pltpu


# ---------------------------------------------------------------------------
# Fused kernel: conditioning MLPs + affine/lrelu/affine/lrelu on one lane tile.
# ---------------------------------------------------------------------------
def _dfblk_fused_kernel(yexp_ref, w1s_ref, b1s_ref, w2e_ref, b2e_ref,
                        x_ref, o_ref):
    """One grid step = one lane tile of the (R=B*C, HW) slab.

    yexp_ref : (R, D)    condition rows, each batch row repeated C times (row r -> batch r//C)
    w1s_ref  : (D, 4C)   first-layer weights of the 4 MLPs stacked along lanes
    b1s_ref  : (1, 4C)   first-layer biases
    w2e_ref  : (4, R, C) w2e[k][r, :] = W2[k][:, r % C]   (row-expanded W2^T)
    b2e_ref  : (4, R, 1) b2e[k][r, 0] = b2[k][r % C]
    x_ref    : (R, TC)   input lane tile
    o_ref    : (R, TC)   output lane tile
    k order  : 0 = gamma0, 1 = beta0, 2 = gamma1, 3 = beta1
    """
    f32 = jnp.float32
    C = w2e_ref.shape[-1]

    # ---- tiny conditioning MLPs (recomputed per block; hidden under DMA) ----
    # All four first layers in a single MXU GEMM: (R, D) @ (D, 4C).
    h_all = jnp.dot(yexp_ref[...].astype(f32), w1s_ref[...].astype(f32),
                    preferred_element_type=f32) + b1s_ref[...]
    h_all = jnp.maximum(h_all, 0.0)                      # ReLU -> (R, 4C)

    # Second layers: per-row dot with row-expanded W2^T (exact f32, VPU + lane reduce).
    def second_layer(k):
        h_k = h_all[:, k * C:(k + 1) * C]                # (R, C), static lane slice
        return jnp.sum(h_k * w2e_ref[k], axis=1, keepdims=True) + b2e_ref[k]  # (R, 1)

    g0 = second_layer(0)     # gamma0
    b0 = second_layer(1)     # beta0
    g1 = second_layer(2)     # gamma1
    b1 = second_layer(3)     # beta1

    # ---- elementwise hot path (HBM-bound): affine -> lrelu -> affine -> lrelu
    x = x_ref[...].astype(f32)                           # (R, TC)
    t = g0 * x + b0
    t = jnp.maximum(t, 0.2 * t)                          # LeakyReLU(0.2)
    t = g1 * t + b1
    t = jnp.maximum(t, 0.2 * t)
    o_ref[...] = t.astype(o_ref.dtype)


# ---------------------------------------------------------------------------
# Full DFBLK forward (NCHW in / NCHW out, like the PyTorch module).
# ---------------------------------------------------------------------------
def dfblk_forward(x_nchw, y, params):
    B, C, H, W = x_nchw.shape
    D = y.shape[-1]
    HW = H * W
    R = B * C

    # Pack parameters / condition for the fused kernel (tiny, exact transforms).
    w1, b1, w2, b2 = params["w1"], params["b1"], params["w2"], params["b2"]
    w1s = jnp.transpose(w1, (1, 0, 2)).reshape(D, 4 * C)        # (D, 4C)
    b1s = b1.reshape(1, 4 * C)                                  # (1, 4C)
    w2e = jnp.tile(jnp.transpose(w2, (0, 2, 1)), (1, B, 1))     # (4, R, C)
    b2e = jnp.tile(jnp.transpose(b2, (0, 2, 1)), (1, B, 1))     # (4, R, 1)
    yexp = jnp.repeat(y, C, axis=0)                             # (R, D)

    x_slab = x_nchw.reshape(R, HW)                              # free reshape (contiguous)

    # ---- lane tiling: biggest lane-dense block that is v7x-VMEM-safe --------
    LANE = 128
    MAX_BLOCK_BYTES = 4 << 20          # per x block; double-buffered in+out ~= 16 MiB,
                                       # well under v7x's 32 MiB scoped / 64 MiB physical VMEM.
    col_bytes = R * x_slab.dtype.itemsize
    if HW <= LANE or HW * col_bytes <= (1 << 20):
        tc = HW                        # tiny tensor: single block, grid of 1
    else:
        # >=2 tiles (v7x megacore), each a multiple of 128 lanes, <= ~4 MiB.
        # (For extremely large B*C one would also tile rows; not needed here.)
        tc = min(MAX_BLOCK_BYTES // col_bytes, pl.cdiv(HW, 2))
        tc = max(LANE, (tc // LANE) * LANE)
    grid = (pl.cdiv(HW, tc),)

    out = pl.pallas_call(
        _dfblk_fused_kernel,
        out_shape=jax.ShapeDtypeStruct((R, HW), x_slab.dtype),
        grid_spec=pltpu.PrefetchScalarGridSpec(
            num_scalar_prefetch=0,
            grid=grid,
            in_specs=[
                pl.BlockSpec((R, D), lambda j: (0, 0)),          # yexp (resident)
                pl.BlockSpec((D, 4 * C), lambda j: (0, 0)),      # w1s
                pl.BlockSpec((1, 4 * C), lambda j: (0, 0)),      # b1s
                pl.BlockSpec((4, R, C), lambda j: (0, 0, 0)),    # w2e
                pl.BlockSpec((4, R, 1), lambda j: (0, 0, 0)),    # b2e
                pl.BlockSpec((R, tc), lambda j: (0, j)),         # x lane tile
            ],
            out_specs=pl.BlockSpec((R, tc), lambda j: (0, j)),
        ),
        compiler_params=pltpu.CompilerParams(
            dimension_semantics=("parallel",),   # shard spatial tiles across TCs on v7x
            vmem_limit_bytes=32 * 1024 * 1024,
        ),
    )(yexp, w1s, b1s, w2e, b2e, x_slab)

    return out.reshape(B, C, H, W)


# ---------------------------------------------------------------------------
# Pure-JAX reference for validation.
# ---------------------------------------------------------------------------
def dfblk_reference(x_nchw, y, params):
    def mlp(k):
        h = jnp.maximum(y @ params["w1"][k] + params["b1"][k], 0.0)
        return h @ params["w2"][k] + params["b2"][k]          # (B, C)

    def lrelu(v):
        return jnp.where(v > 0, v, 0.2 * v)

    g0, b0, g1, b1 = (mlp(k)[:, :, None, None] for k in range(4))
    h = lrelu(g0 * x_nchw + b0)
    h = lrelu(g1 * h + b1)
    return h


if __name__ == "__main__":
    # Small shapes consistent with the module: batch=2, in_ch=4, 16x16, cond_dim=32
    B, C, H, W, D = 2, 4, 16, 16, 32

    key = jax.random.PRNGKey(0)
    kx, ky, k1, k2, k3, k4 = jax.random.split(key, 6)

    x = jax.random.normal(kx, (B, C, H, W), dtype=jnp.float32)
    y = jax.random.normal(ky, (B, D), dtype=jnp.float32)

    # Parameters for the 4 MLPs (gamma0, beta0, gamma1, beta1), stacked on dim 0.
    # NOTE: the PyTorch _initialize() zeros linear2.weight (gamma bias=1, beta bias=0),
    # which makes the forward degenerate to leaky_relu(leaky_relu(x)).  We use small
    # deterministic random weights instead so the whole compute path is exercised;
    # forward semantics are identical for any weight values.
    params = {
        "w1": 0.1 * jax.random.normal(k1, (4, D, C), dtype=jnp.float32),
        "b1": 0.1 * jax.random.normal(k2, (4, 1, C), dtype=jnp.float32),
        "w2": 0.1 * jax.random.normal(k3, (4, C, C), dtype=jnp.float32),
        "b2": 0.1 * jax.random.normal(k4, (4, 1, C), dtype=jnp.float32),
    }

    fwd = jax.jit(dfblk_forward)
    out = jax.block_until_ready(fwd(x, y, params))
    ref = jax.block_until_ready(dfblk_reference(x, y, params))

    assert out.shape == (B, C, H, W)
    assert jnp.allclose(out, ref, atol=1e-4, rtol=1e-4), "mismatch vs reference"

    print("KERNEL_OK")
</pallas_src>

<mosaic_0001>
module attributes {stable_mosaic.version = 11 : i64} {
  func.func @_dfblk_fused_kernel(%arg0: i32, %arg1: memref<8x32xf32, #tpu.memory_space<vmem>>, %arg2: memref<32x16xf32, #tpu.memory_space<vmem>>, %arg3: memref<1x16xf32, #tpu.memory_space<vmem>>, %arg4: memref<4x8x4xf32, #tpu.memory_space<vmem>>, %arg5: memref<4x8x1xf32, #tpu.memory_space<vmem>>, %arg6: memref<8x256xf32, #tpu.memory_space<vmem>>, %arg7: memref<8x256xf32, #tpu.memory_space<vmem>>) attributes {dimension_semantics = [#tpu.dimension_semantics<parallel>], iteration_bounds = array<i64: 1>, scalar_prefetch = 0 : i64, scratch_operands = 0 : i64, tpu.core_type = #tpu.core_type<tc>, window_params = [{pipeline_mode = #tpu.pipeline_mode<synchronous>, transform_indices = @transform_0, window_bounds = array<i64: 8, 32>}, {pipeline_mode = #tpu.pipeline_mode<synchronous>, transform_indices = @transform_1, window_bounds = array<i64: 32, 16>}, {pipeline_mode = #tpu.pipeline_mode<synchronous>, transform_indices = @transform_2, window_bounds = array<i64: 1, 16>}, {pipeline_mode = #tpu.pipeline_mode<synchronous>, transform_indices = @transform_3, window_bounds = array<i64: 4, 8, 4>}, {pipeline_mode = #tpu.pipeline_mode<synchronous>, transform_indices = @transform_4, window_bounds = array<i64: 4, 8, 1>}, {transform_indices = @transform_5, window_bounds = array<i64: 8, 256>}, {transform_indices = @transform_6, window_bounds = array<i64: 8, 256>}]} {
    %c0 = arith.constant 0 : index
    %c0_0 = arith.constant 0 : index
    %0 = vector.load %arg1[%c0, %c0_0] : memref<8x32xf32, #tpu.memory_space<vmem>>, vector<8x32xf32>
    %c0_1 = arith.constant 0 : index
    %c0_2 = arith.constant 0 : index
    %1 = vector.load %arg2[%c0_1, %c0_2] : memref<32x16xf32, #tpu.memory_space<vmem>>, vector<32x16xf32>
    %cst = arith.constant dense<0.000000e+00> : vector<8x16xf32>
    %2 = tpu.matmul %0, %1, %cst {dimension_numbers = #tpu.dot_dimension_numbers<[1], [0], [0], [1], [0, 0, 1, 1], [], []>} : vector<8x32xf32>, vector<32x16xf32>, vector<8x16xf32> -> vector<8x16xf32>
    %c0_3 = arith.constant 0 : index
    %c0_4 = arith.constant 0 : index
    %3 = vector.load %arg3[%c0_3, %c0_4] : memref<1x16xf32, #tpu.memory_space<vmem>>, vector<1x16xf32>
    %4 = vector.broadcast %3 : vector<1x16xf32> to vector<8x16xf32>
    %5 = arith.addf %2, %4 : vector<8x16xf32>
    %cst_5 = arith.constant 0.000000e+00 : f32
    %6 = vector.broadcast %cst_5 : f32 to vector<8x16xf32>
    %7 = arith.maximumf %5, %6 : vector<8x16xf32>
    %8 = vector.extract_strided_slice %7 {offsets = [0, 0], sizes = [8, 4], strides = [1, 1]} : vector<8x16xf32> to vector<8x4xf32>
    %c0_6 = arith.constant 0 : index
    %c0_7 = arith.constant 0 : index
    %c0_8 = arith.constant 0 : index
    %9 = vector.load %arg4[%c0_6, %c0_7, %c0_8] : memref<4x8x4xf32, #tpu.memory_space<vmem>>, vector<1x8x4xf32>
    %10 = vector.shape_cast %9 : vector<1x8x4xf32> to vector<8x4xf32>
    %11 = arith.mulf %8, %10 : vector<8x4xf32>
    %cst_9 = arith.constant dense<0.000000e+00> : vector<8xf32>
    %12 = vector.multi_reduction <add>, %11, %cst_9 [1] : vector<8x4xf32> to vector<8xf32>
    %13 = vector.shape_cast %12 : vector<8xf32> to vector<8x1xf32>
    %c0_10 = arith.constant 0 : index
    %c0_11 = arith.constant 0 : index
    %c0_12 = arith.constant 0 : index
    %14 = vector.load %arg5[%c0_10, %c0_11, %c0_12] : memref<4x8x1xf32, #tpu.memory_space<vmem>>, vector<1x8x1xf32>
    %15 = vector.shape_cast %14 : vector<1x8x1xf32> to vector<8x1xf32>
    %16 = arith.addf %13, %15 : vector<8x1xf32>
    %17 = vector.extract_strided_slice %7 {offsets = [0, 4], sizes = [8, 4], strides = [1, 1]} : vector<8x16xf32> to vector<8x4xf32>
    %c1 = arith.constant 1 : index
    %c0_13 = arith.constant 0 : index
    %c0_14 = arith.constant 0 : index
    %18 = vector.load %arg4[%c1, %c0_13, %c0_14] : memref<4x8x4xf32, #tpu.memory_space<vmem>>, vector<1x8x4xf32>
    %19 = vector.shape_cast %18 : vector<1x8x4xf32> to vector<8x4xf32>
    %20 = arith.mulf %17, %19 : vector<8x4xf32>
    %cst_15 = arith.constant dense<0.000000e+00> : vector<8xf32>
    %21 = vector.multi_reduction <add>, %20, %cst_15 [1] : vector<8x4xf32> to vector<8xf32>
    %22 = vector.shape_cast %21 : vector<8xf32> to vector<8x1xf32>
    %c1_16 = arith.constant 1 : index
    %c0_17 = arith.constant 0 : index
    %c0_18 = arith.constant 0 : index
    %23 = vector.load %arg5[%c1_16, %c0_17, %c0_18] : memref<4x8x1xf32, #tpu.memory_space<vmem>>, vector<1x8x1xf32>
    %24 = vector.shape_cast %23 : vector<1x8x1xf32> to vector<8x1xf32>
    %25 = arith.addf %22, %24 : vector<8x1xf32>
    %26 = vector.extract_strided_slice %7 {offsets = [0, 8], sizes = [8, 4], strides = [1, 1]} : vector<8x16xf32> to vector<8x4xf32>
    %c2 = arith.constant 2 : index
    %c0_19 = arith.constant 0 : index
    %c0_20 = arith.constant 0 : index
    %27 = vector.load %arg4[%c2, %c0_19, %c0_20] : memref<4x8x4xf32, #tpu.memory_space<vmem>>, vector<1x8x4xf32>
    %28 = vector.shape_cast %27 : vector<1x8x4xf32> to vector<8x4xf32>
    %29 = arith.mulf %26, %28 : vector<8x4xf32>
    %cst_21 = arith.constant dense<0.000000e+00> : vector<8xf32>
    %30 = vector.multi_reduction <add>, %29, %cst_21 [1] : vector<8x4xf32> to vector<8xf32>
    %31 = vector.shape_cast %30 : vector<8xf32> to vector<8x1xf32>
    %c2_22 = arith.constant 2 : index
    %c0_23 = arith.constant 0 : index
    %c0_24 = arith.constant 0 : index
    %32 = vector.load %arg5[%c2_22, %c0_23, %c0_24] : memref<4x8x1xf32, #tpu.memory_space<vmem>>, vector<1x8x1xf32>
    %33 = vector.shape_cast %32 : vector<1x8x1xf32> to vector<8x1xf32>
    %34 = arith.addf %31, %33 : vector<8x1xf32>
    %35 = vector.extract_strided_slice %7 {offsets = [0, 12], sizes = [8, 4], strides = [1, 1]} : vector<8x16xf32> to vector<8x4xf32>
    %c3 = arith.constant 3 : index
    %c0_25 = arith.constant 0 : index
    %c0_26 = arith.constant 0 : index
    %36 = vector.load %arg4[%c3, %c0_25, %c0_26] : memref<4x8x4xf32, #tpu.memory_space<vmem>>, vector<1x8x4xf32>
    %37 = vector.shape_cast %36 : vector<1x8x4xf32> to vector<8x4xf32>
    %38 = arith.mulf %35, %37 : vector<8x4xf32>
    %cst_27 = arith.constant dense<0.000000e+00> : vector<8xf32>
    %39 = vector.multi_reduction <add>, %38, %cst_27 [1] : vector<8x4xf32> to vector<8xf32>
    %40 = vector.shape_cast %39 : vector<8xf32> to vector<8x1xf32>
    %c3_28 = arith.constant 3 : index
    %c0_29 = arith.constant 0 : index
    %c0_30 = arith.constant 0 : index
    %41 = vector.load %arg5[%c3_28, %c0_29, %c0_30] : memref<4x8x1xf32, #tpu.memory_space<vmem>>, vector<1x8x1xf32>
    %42 = vector.shape_cast %41 : vector<1x8x1xf32> to vector<8x1xf32>
    %43 = arith.addf %40, %42 : vector<8x1xf32>
    %c0_31 = arith.constant 0 : index
    %c0_32 = arith.constant 0 : index
    %44 = vector.load %arg6[%c0_31, %c0_32] : memref<8x256xf32, #tpu.memory_space<vmem>>, vector<8x256xf32>
    %45 = vector.broadcast %16 : vector<8x1xf32> to vector<8x256xf32>
    %46 = arith.mulf %45, %44 : vector<8x256xf32>
    %47 = vector.broadcast %25 : vector<8x1xf32> to vector<8x256xf32>
    %48 = arith.addf %46, %47 : vector<8x256xf32>
    %cst_33 = arith.constant 2.000000e-01 : f32
    %49 = vector.broadcast %cst_33 : f32 to vector<8x256xf32>
    %50 = arith.mulf %49, %48 : vector<8x256xf32>
    %51 = arith.maximumf %48, %50 : vector<8x256xf32>
    %52 = vector.broadcast %34 : vector<8x1xf32> to vector<8x256xf32>
    %53 = arith.mulf %52, %51 : vector<8x256xf32>
    %54 = vector.broadcast %43 : vector<8x1xf32> to vector<8x256xf32>
    %55 = arith.addf %53, %54 : vector<8x256xf32>
    %cst_34 = arith.constant 2.000000e-01 : f32
    %56 = vector.broadcast %cst_34 : f32 to vector<8x256xf32>
    %57 = arith.mulf %56, %55 : vector<8x256xf32>
    %58 = arith.maximumf %55, %57 : vector<8x256xf32>
    %c0_35 = arith.constant 0 : index
    %c0_36 = arith.constant 0 : index
    %59 = vector.load %arg7[%c0_35, %c0_36] : memref<8x256xf32, #tpu.memory_space<vmem>>, vector<8x256xf32>
    tpu.vector_store %arg7[%c0_35, %c0_36], %58 {strides = array<i32>} : memref<8x256xf32, #tpu.memory_space<vmem>>, vector<8x256xf32>,
    return
  }
  func.func @transform_0(%arg0: i32) -> (i32, i32) {
    %c0_i32 = arith.constant 0 : i32
    %c0_i32_0 = arith.constant 0 : i32
    %c0_i32_1 = arith.constant 0 : i32
    return %c0_i32, %c0_i32_0 : i32, i32
  }
  func.func @transform_1(%arg0: i32) -> (i32, i32) {
    %c0_i32 = arith.constant 0 : i32
    %c0_i32_0 = arith.constant 0 : i32
    %c0_i32_1 = arith.constant 0 : i32
    return %c0_i32, %c0_i32_0 : i32, i32
  }
  func.func @transform_2(%arg0: i32) -> (i32, i32) {
    %c0_i32 = arith.constant 0 : i32
    %c0_i32_0 = arith.constant 0 : i32
    %c0_i32_1 = arith.constant 0 : i32
    return %c0_i32, %c0_i32_0 : i32, i32
  }
  func.func @transform_3(%arg0: i32) -> (i32, i32, i32) {
    %c0_i32 = arith.constant 0 : i32
    %c0_i32_0 = arith.constant 0 : i32
    %c0_i32_1 = arith.constant 0 : i32
    %c0_i32_2 = arith.constant 0 : i32
    return %c0_i32, %c0_i32_0, %c0_i32_1 : i32, i32, i32
  }
  func.func @transform_4(%arg0: i32) -> (i32, i32, i32) {
    %c0_i32 = arith.constant 0 : i32
    %c0_i32_0 = arith.constant 0 : i32
    %c0_i32_1 = arith.constant 0 : i32
    %c0_i32_2 = arith.constant 0 : i32
    return %c0_i32, %c0_i32_0, %c0_i32_1 : i32, i32, i32
  }
  func.func @transform_5(%arg0: i32) -> (i32, i32) {
    %c0_i32 = arith.constant 0 : i32
    %c0_i32_0 = arith.constant 0 : i32
    return %c0_i32, %arg0 : i32, i32
  }
  func.func @transform_6(%arg0: i32) -> (i32, i32) {
    %c0_i32 = arith.constant 0 : i32
    %c0_i32_0 = arith.constant 0 : i32
    return %c0_i32, %arg0 : i32, i32
  }
}

</mosaic_0001>

<llo_original>
// kernel: dfblk_forward.1
$region0: #{dfblk_forward.1}
  #allocation0 [shape = 'u32[]', space=smem, size = 0x4, offset = 0x4, fixed_abs, tag = 'smem constant byte address 0x4 - core index']
  #allocation1 [shape = 'u32[144,128]{1,0:T(1,128)}', space=vmem, size = 0x12000, scoped, tag = 'internal scratch']
  %s0 = inlined_call_operand.vmem [shape: f32[8,32], index: 0, kind: input, shape index: {}]
  %s1 = inlined_call_operand.vmem [shape: f32[32,16], index: 1, kind: input, shape index: {}]
  %s2 = inlined_call_operand.vmem [shape: f32[1,16], index: 2, kind: input, shape index: {}]
  %s3 = inlined_call_operand.vmem [shape: f32[4,8,4], index: 3, kind: input, shape index: {}]
  %s4 = inlined_call_operand.vmem [shape: f32[4,8,1], index: 4, kind: input, shape index: {}]
  %s5 = inlined_call_operand.vmem [shape: f32[8,256], index: 5, kind: input, shape index: {}]
  %s6 = inlined_call_operand.vmem [shape: f32[8,256], index: 6, kind: output, shape index: {}]
  %s7 = sld [smem:[#allocation0]]
  $region34: #{dfblk_forward.1} parent=0
    _
  %s9 = ssub.s32 1, %s7
  %s10 = scalar_select 0, %s9, %s7
  // Predicated region
  $region2: #{dfblk_forward.1} parent=0 // pred_check
    _
  $region3: #{dfblk_forward.1} parent=0 // pred_check_branch
    %12 = sbr.rel (0) target = $region5
  $region4: #{dfblk_forward.1} parent=0 // pred_region
    _
  $region5: #{dfblk_forward.1} parent=0 // pred_fallthru
    _
  // Predicated region
  $region6: #{dfblk_forward.1} parent=0 // pred_check
    _
  $region7: #{dfblk_forward.1} parent=0 // pred_check_branch
    %14 = sbr.rel (0) target = $region9
  $region8: #{dfblk_forward.1} parent=0 // pred_region
    _
  $region9: #{dfblk_forward.1} parent=0 // pred_fallthru
    _
  // Predicated region
  $region10: #{dfblk_forward.1} parent=0 // pred_check
    _
  $region11: #{dfblk_forward.1} parent=0 // pred_check_branch
    %16 = sbr.rel (0) target = $region13
  $region12: #{dfblk_forward.1} parent=0 // pred_region
    _
  $region13: #{dfblk_forward.1} parent=0 // pred_fallthru
    _
  // Predicated region
  $region14: #{dfblk_forward.1} parent=0 // pred_check
    _
  $region15: #{dfblk_forward.1} parent=0 // pred_check_branch
    %18 = sbr.rel (0) target = $region17
  $region16: #{dfblk_forward.1} parent=0 // pred_region
    _
  $region17: #{dfblk_forward.1} parent=0 // pred_fallthru
    _
  // Predicated region
  $region18: #{dfblk_forward.1} parent=0 // pred_check
    _
  $region19: #{dfblk_forward.1} parent=0 // pred_check_branch
    %20 = sbr.rel (0) target = $region21
  $region20: #{dfblk_forward.1} parent=0 // pred_region
    _
  $region21: #{dfblk_forward.1} parent=0 // pred_fallthru
    _
  // Predicated region
  $region22: #{dfblk_forward.1} parent=0 // pred_check
    _
  $region23: #{dfblk_forward.1} parent=0 // pred_check_branch
    %22 = sbr.rel (0) target = $region25
  $region24: #{dfblk_forward.1} parent=0 // pred_region
    _
  $region25: #{dfblk_forward.1} parent=0 // pred_fallthru
    _
  %v23 = vld [vmem:[%s0] sm:$0xff]
  %v24 = vld [vmem:[%s1] sm:$0xff]
  %v25 = vld [vmem:[%s1 + $0x8] sm:$0xff]
  %v26 = vld [vmem:[%s1 + $0x10] sm:$0xff]
  %v27 = vld [vmem:[%s1 + $0x18] sm:$0xff]
  %v28 = vld [vmem:[%s2] sm:$0x1]
  %v30 = vlaneseq
  %v31 = vshrl.u32 %v30, 7
  %v32 = vsub.s32 0, %v31
  %v33 = vrot.slane %v28, %v32
  %vm35 = vcmask 261120
  %v37 = vsel %vm35, %v23, 0
  %39 = vmatprep.subr.mxu0 0.0
  %40 = vmatpush1.msra.mxu0 %v24
  %41 = vmatprep.subr.mxu0 0.0
  %42 = vmatpush1.msra.mxu0 %v25
  %43 = vmatprep.subr.mxu0 0.0
  %44 = vmatpush1.msra.mxu0 %v26
  %45 = vmatprep.subr.mxu0 0.0
  %46 = vmatpush1.msra.mxu0 %v27
  %47 = vmatprep.subr.mxu0 0.0
  %48 = vmatpush1.msra.mxu0 0.0
  %49 = vmatprep.subr.mxu0 0.0
  %50 = vmatpush1.msra.mxu0 0.0
  %51 = vmatprep.subr.mxu0 0.0
  %52 = vmatpush1.msra.mxu0 0.0
  %53 = vmatprep.subr.mxu0 0.0
  %54 = vmatpush1.msra.mxu0 0.0
  %55 = vmatprep.subr.mxu0 0.0
  %56 = vmatpush1.msra.mxu0 0.0
  %57 = vmatprep.subr.mxu0 0.0
  %58 = vmatpush1.msra.mxu0 0.0
  %59 = vmatprep.subr.mxu0 0.0
  %60 = vmatpush1.msra.mxu0 0.0
  %61 = vmatprep.subr.mxu0 0.0
  %62 = vmatpush1.msra.mxu0 0.0
  %63 = vmatprep.subr.mxu0 0.0
  %64 = vmatpush1.msra.mxu0 0.0
  %65 = vmatprep.subr.mxu0 0.0
  %66 = vmatpush1.msra.mxu0 0.0
  %67 = vmatprep.subr.mxu0 0.0
  %68 = vmatpush1.msra.mxu0 0.0
  %69 = vmatprep.subr.mxu0 0.0
  %70 = vmatpush1.msra.mxu0 0.0
  %71 = vmatprep.subr.mxu0 0.0
  %72 = vmatpush1.msra.mxu0 0.0
  %73 = vmatprep.subr.mxu0 0.0
  %74 = vmatpush1.msra.mxu0 0.0
  %75 = vmatprep.subr.mxu0 0.0
  %76 = vmatpush1.msra.mxu0 0.0
  %77 = vmatprep.subr.mxu0 0.0
  %78 = vmatpush1.msra.mxu0 0.0
  %79 = vmatprep.subr.mxu0 0.0
  %80 = vmatpush1.msra.mxu0 0.0
  %81 = vmatprep.subr.mxu0 0.0
  %82 = vmatpush1.msra.mxu0 0.0
  %83 = vmatprep.subr.mxu0 0.0
  %84 = vmatpush1.msra.mxu0 0.0
  %85 = vmatprep.subr.mxu0 0.0
  %86 = vmatpush1.msra.mxu0 0.0
  %87 = vmatprep.subr.mxu0 0.0
  %88 = vmatpush1.msra.mxu0 0.0
  %89 = vmatprep.subr.mxu0 0.0
  %90 = vmatpush1.msra.mxu0 0.0
  %91 = vmatprep.subr.mxu0 0.0
  %92 = vmatpush1.msra.mxu0 0.0
  %93 = vmatprep.subr.mxu0 0.0
  %94 = vmatpush1.msra.mxu0 0.0
  %95 = vmatprep.subr.mxu0 0.0
  %96 = vmatpush1.msra.mxu0 0.0
  %97 = vmatprep.subr.mxu0 0.0
  %98 = vmatpush1.msra.mxu0 0.0
  %99 = vmatprep.subr.mxu0 0.0
  %100 = vmatpush1.msra.mxu0 0.0
  %101 = vmatprep.subr.mxu0 0.0
  %102 = vmatpush1.msra.mxu0 0.0
  %103 = vmatprep.mubr.f32.mxu0 0.0
  %104 = vmatmul.mubr.f32.gmra.mrb[0].mxu0 %v37
  %v105 = vpop.f32.mrb[0].mxu0
  %v106 = vadd.f32 %v33, %v105
  %v107 = vpop.f32.mrb[0].mxu0
  %108 = vdwg.mxu0
  %v109 = vmax.f32 %v106, 0.0
  %v110 = vld [vmem:[%s3] sm:$0xff]
  %v111 = vmul.f32 %v109, %v110
  %vm112 = vcmask 31744
  %v113 = vsel %vm112, %v111, 0.0
  %114 = vadd.xlane.f32.xlu0 %v113
  %v115 = vpop.xlane.xlu0 %114
  %v116 = vld [vmem:[%s4] sm:$0xff]
  %v117 = vadd.f32 %v115, %v116
  %s118 = scalar_lea.vmem %s3, 8
  %v119 = vld [vmem:[%s118] sm:$0xff]
  %121 = vrot.lane.b32.xlu0 %v119, 4
  %v122 = vpop.permute.xlu0 %121
  %v124 = vmul.f32 %v109, %v122
  %126 = vrot.lane.b32.xlu0 %v124, 124
  %v127 = vpop.permute.xlu0 %126
  %v129 = vsel %vm112, %v127, 0.0
  %130 = vadd.xlane.f32.xlu0 %v129
  %v131 = vpop.xlane.xlu0 %130
  %s132 = scalar_lea.vmem %s4, 8
  %v133 = vld [vmem:[%s132] sm:$0xff]
  %v134 = vadd.f32 %v131, %v133
  %s135 = scalar_lea.vmem %s3, 16
  %v136 = vld [vmem:[%s135] sm:$0xff]
  %138 = vrot.lane.b32.xlu0 %v136, 8
  %v139 = vpop.permute.xlu0 %138
  %v141 = vmul.f32 %v109, %v139
  %143 = vrot.lane.b32.xlu0 %v141, 120
  %v144 = vpop.permute.xlu0 %143
  %v146 = vsel %vm112, %v144, 0.0
  %147 = vadd.xlane.f32.xlu0 %v146
  %v148 = vpop.xlane.xlu0 %147
  %s149 = scalar_lea.vmem %s4, 16
  %v150 = vld [vmem:[%s149] sm:$0xff]
  %v151 = vadd.f32 %v148, %v150
  %s152 = scalar_lea.vmem %s3, 24
  %v153 = vld [vmem:[%s152] sm:$0xff]
  %155 = vrot.lane.b32.xlu0 %v153, 12
  %v156 = vpop.permute.xlu0 %155
  %v158 = vmul.f32 %v109, %v156
  %160 = vrot.lane.b32.xlu0 %v158, 116
  %v161 = vpop.permute.xlu0 %160
  %v163 = vsel %vm112, %v161, 0.0
  %164 = vadd.xlane.f32.xlu0 %v163
  %v165 = vpop.xlane.xlu0 %164
  %s166 = scalar_lea.vmem %s4, 24
  %v167 = vld [vmem:[%s166] sm:$0xff]
  %v168 = vadd.f32 %v165, %v167
  %v169 = vld [vmem:[%s5] sm:$0xff]
  %v170 = vld [vmem:[%s5 + $0x8] sm:$0xff]
  %172 = vset.pattern.permute.xlu0 0
  %173 = vperm.xlu0 %172, %v117
  %v174 = vpop.permute.xlu0 %173
  %v176 = vmul.f32 %v174, %v169
  %v177 = vmul.f32 %v174, %v170
  %179 = vset.pattern.permute.xlu0 0
  %180 = vperm.xlu0 %179, %v134
  %v181 = vpop.permute.xlu0 %180
  %v183 = vadd.f32 %v176, %v181
  %v184 = vadd.f32 %v177, %v181
  %v185 = vmul.f32 %v183, 0.2
  %v186 = vmul.f32 %v184, 0.2
  %v187 = vmax.f32 %v183, %v185
  %v188 = vmax.f32 %v184, %v186
  %190 = vset.pattern.permute.xlu0 0
  %191 = vperm.xlu0 %190, %v151
  %v192 = vpop.permute.xlu0 %191
  %v194 = vmul.f32 %v192, %v187
  %v195 = vmul.f32 %v192, %v188
  %197 = vset.pattern.permute.xlu0 0
  %198 = vperm.xlu0 %197, %v168
  %v199 = vpop.permute.xlu0 %198
  %v201 = vadd.f32 %v194, %v199
  %v202 = vadd.f32 %v195, %v199
  %v203 = vmul.f32 %v201, 0.2
  %v204 = vmul.f32 %v202, 0.2
  %v205 = vmax.f32 %v201, %v203
  %v206 = vmax.f32 %v202, %v204
  %207 = vst [vmem:[%s6] sm:$0xff] %v205
  %208 = vst [vmem:[%s6 + $0x8] sm:$0xff] %v206
  // Predicated region
  $region26: #{dfblk_forward.1} parent=0 // pred_check
    _
  $region27: #{dfblk_forward.1} parent=0 // pred_check_branch
    %210 = sbr.rel (0) target = $region29
  $region28: #{dfblk_forward.1} parent=0 // pred_region
    _
  $region29: #{dfblk_forward.1} parent=0 // pred_fallthru
    _
  // Predicated region
  $region30: #{dfblk_forward.1} parent=0 // pred_check
    _
  $region31: #{dfblk_forward.1} parent=0 // pred_check_branch
    %212 = sbr.rel (0) target = $region33
  $region32: #{dfblk_forward.1} parent=0 // pred_region
    _
  $region33: #{dfblk_forward.1} parent=0 // pred_fallthru
    _

</llo_original>
